<compile_context>
chip_gen: v7x
topology: tpu7x:2x2x1
jax: 0.10.0
libtpu: 0.0.40
codegen_flags: <defaults>
</compile_context>

<pallas_src>
import jax
import jax.numpy as jnp
from jax.experimental import pallas as pl
from jax.experimental.pallas import tpu as pltpu

C_IN = 32
C_OUT = 16


def relu6_conv1x1_kernel(w_ref, x_ref, o_ref):
    # w_ref: (C_OUT, C_IN) VMEM-resident weight (constant index_map -> not re-DMA'd)
    # x_ref: (b_tile, C_IN, tile_p)  -- channels on sublanes, pixels on lanes
    # o_ref: (b_tile, C_OUT, tile_p)
    w = w_ref[...]
    b_tile = x_ref.shape[0]
    for b in range(b_tile):  # static unroll; b_tile is small
        x6 = jnp.clip(x_ref[b, :, :], 0.0, 6.0)               # ReLU6 on the VPU
        o_ref[b, :, :] = jnp.dot(
            w, x6, preferred_element_type=jnp.float32         # MXU, f32 accumulate
        ).astype(o_ref.dtype)


def _pick_tiling(n, hw, target_px):
    """Pick (b_tile, tile_p).

    tile_p: pixel tile (lane axis), multiple of 128, at most target_px and no
        larger than hw rounded up to a full lane group.
    b_tile: images folded per grid step.  Only kicks in when one pixel tile
        already covers the whole image (small spatial).  Capped so that for
        n > 1 at least two grid steps remain (keeps both v7x TensorCores busy).
    """
    hw_rounded = pl.cdiv(hw, 128) * 128
    tile_p = min(target_px, hw_rounded)
    b_tile = 1
    if tile_p == hw_rounded and n > 1:
        max_b = max(1, target_px // hw_rounded)
        max_b = min(max_b, max(1, n // 2))   # leave >=2 batch groups for megacore
        for d in range(min(n, max_b), 0, -1):
            if n % d == 0:
                b_tile = d
                break
    return b_tile, tile_p


def relu6_conv1x1(x_nchw, weight, *, tile_p=8192):
    """x_nchw: (N, C_IN, H, W) float32; weight: (C_OUT, C_IN, 1, 1) float32."""
    n, c, h, w = x_nchw.shape
    assert c == C_IN
    hw = h * w

    # Free views: (N, C_IN, H*W) keeps pixels on the fast (lane) axis.
    x_rows = x_nchw.reshape(n, c, hw)
    w_mat = weight.reshape(C_OUT, C_IN)

    b_tile, tile_p = _pick_tiling(n, hw, tile_p)
    grid = (n // b_tile, pl.cdiv(hw, tile_p))  # boundary pixel block is masked

    out = pl.pallas_call(
        relu6_conv1x1_kernel,
        out_shape=jax.ShapeDtypeStruct((n, C_OUT, hw), x_nchw.dtype),
        grid_spec=pltpu.PrefetchScalarGridSpec(
            num_scalar_prefetch=0,
            grid=grid,
            in_specs=[
                # Weight: constant block index -> stays resident in VMEM.
                pl.BlockSpec((C_OUT, C_IN), lambda g, p: (0, 0)),
                pl.BlockSpec((b_tile, C_IN, tile_p), lambda g, p: (g, 0, p)),
            ],
            out_specs=pl.BlockSpec((b_tile, C_OUT, tile_p), lambda g, p: (g, 0, p)),
        ),
        compiler_params=pltpu.CompilerParams(
            dimension_semantics=("parallel", "parallel"),
        ),
    )(w_mat, x_rows)

    # (N, C_OUT, H*W) -> (N, C_OUT, H, W): free reshape, already NCHW.
    return out.reshape(n, C_OUT, h, w)


def _reference(x, w_mat):
    return jnp.einsum("nchw,oc->nohw", jnp.clip(x, 0.0, 6.0), w_mat)


if __name__ == "__main__":
    key = jax.random.PRNGKey(0)
    kx, kw, kx2 = jax.random.split(key, 3)

    # Small shapes consistent with the module: batch=2, C_in=32, spatial=16x16.
    x = jax.random.normal(kx, (2, C_IN, 16, 16), dtype=jnp.float32)
    # Deterministic synthetic conv weight (C_OUT, C_IN, 1, 1), no bias.
    weight = jax.random.normal(kw, (C_OUT, C_IN, 1, 1), dtype=jnp.float32) * 0.1
    w_mat = weight.reshape(C_OUT, C_IN)

    out = jax.block_until_ready(relu6_conv1x1(x, weight))
    ref = _reference(x, w_mat)
    assert out.shape == (2, C_OUT, 16, 16)
    assert jnp.allclose(out, ref, atol=1e-3, rtol=1e-3)

    # Second check: H*W not divisible by the pixel tile -> exercises the
    # masked boundary block (replaces the old jnp.pad / slice path).
    x2 = jax.random.normal(kx2, (1, C_IN, 24, 24), dtype=jnp.float32)
    out2 = jax.block_until_ready(relu6_conv1x1(x2, weight, tile_p=128))
    ref2 = _reference(x2, w_mat)
    assert out2.shape == (1, C_OUT, 24, 24)
    assert jnp.allclose(out2, ref2, atol=1e-3, rtol=1e-3)
    assert bool(jnp.all(jnp.isfinite(out2)))  # no garbage leaked from padding

    print("KERNEL_OK")
</pallas_src>

<mosaic_0001>
module attributes {stable_mosaic.version = 11 : i64} {
  func.func @relu6_conv1x1_kernel(%arg0: i32, %arg1: i32, %arg2: memref<16x32xf32, #tpu.memory_space<vmem>>, %arg3: memref<1x32x256xf32, #tpu.memory_space<vmem>>, %arg4: memref<1x16x256xf32, #tpu.memory_space<vmem>>) attributes {dimension_semantics = [#tpu.dimension_semantics<parallel>, #tpu.dimension_semantics<parallel>], iteration_bounds = array<i64: 2, 1>, scalar_prefetch = 0 : i64, scratch_operands = 0 : i64, tpu.core_type = #tpu.core_type<tc>, window_params = [{pipeline_mode = #tpu.pipeline_mode<synchronous>, transform_indices = @transform_0, window_bounds = array<i64: 16, 32>}, {transform_indices = @transform_1, window_bounds = array<i64: 1, 32, 256>}, {transform_indices = @transform_2, window_bounds = array<i64: 1, 16, 256>}]} {
    %c0 = arith.constant 0 : index
    %c0_0 = arith.constant 0 : index
    %0 = vector.load %arg2[%c0, %c0_0] : memref<16x32xf32, #tpu.memory_space<vmem>>, vector<16x32xf32>
    %c0_1 = arith.constant 0 : index
    %c0_2 = arith.constant 0 : index
    %c0_3 = arith.constant 0 : index
    %1 = vector.load %arg3[%c0_1, %c0_2, %c0_3] : memref<1x32x256xf32, #tpu.memory_space<vmem>>, vector<1x32x256xf32>
    %2 = vector.shape_cast %1 : vector<1x32x256xf32> to vector<32x256xf32>
    %cst = arith.constant 0.000000e+00 : f32
    %cst_4 = arith.constant 6.000000e+00 : f32
    %3 = vector.broadcast %cst : f32 to vector<32x256xf32>
    %4 = arith.maximumf %3, %2 : vector<32x256xf32>
    %5 = vector.broadcast %cst_4 : f32 to vector<32x256xf32>
    %6 = arith.minimumf %5, %4 : vector<32x256xf32>
    %cst_5 = arith.constant dense<0.000000e+00> : vector<16x256xf32>
    %7 = tpu.matmul %0, %6, %cst_5 {dimension_numbers = #tpu.dot_dimension_numbers<[1], [0], [0], [1], [0, 0, 1, 1], [], []>} : vector<16x32xf32>, vector<32x256xf32>, vector<16x256xf32> -> vector<16x256xf32>
    %c0_6 = arith.constant 0 : index
    %c0_7 = arith.constant 0 : index
    %c0_8 = arith.constant 0 : index
    %8 = vector.load %arg4[%c0_6, %c0_7, %c0_8] : memref<1x16x256xf32, #tpu.memory_space<vmem>>, vector<1x16x256xf32>
    %9 = vector.shape_cast %8 : vector<1x16x256xf32> to vector<16x256xf32>
    %10 = vector.shape_cast %7 : vector<16x256xf32> to vector<1x16x256xf32>
    tpu.vector_store %arg4[%c0_6, %c0_7, %c0_8], %10 {strides = array<i32>} : memref<1x16x256xf32, #tpu.memory_space<vmem>>, vector<1x16x256xf32>,
    return
  }
  func.func @transform_0(%arg0: i32, %arg1: i32) -> (i32, i32) {
    %c0_i32 = arith.constant 0 : i32
    %c0_i32_0 = arith.constant 0 : i32
    %c0_i32_1 = arith.constant 0 : i32
    return %c0_i32, %c0_i32_0 : i32, i32
  }
  func.func @transform_1(%arg0: i32, %arg1: i32) -> (i32, i32, i32) {
    %c0_i32 = arith.constant 0 : i32
    %c0_i32_0 = arith.constant 0 : i32
    return %arg0, %c0_i32, %arg1 : i32, i32, i32
  }
  func.func @transform_2(%arg0: i32, %arg1: i32) -> (i32, i32, i32) {
    %c0_i32 = arith.constant 0 : i32
    %c0_i32_0 = arith.constant 0 : i32
    return %arg0, %c0_i32, %arg1 : i32, i32, i32
  }
}

</mosaic_0001>

<llo_original>
// kernel: tpu_custom_call.1
$region0: #{tpu_custom_call.1}
  #allocation0 [shape = 'u32[]', space=smem, size = 0x4, offset = 0x4, fixed_abs, tag = 'smem constant byte address 0x4 - core index']
  #allocation1 [shape = 'u32[144,128]{1,0:T(1,128)}', space=vmem, size = 0x12000, scoped, tag = 'internal scratch']
  %s0 = inlined_call_operand.hbm [shape: f32[16,32], index: 0, kind: input, shape index: {}]
  %s1 = inlined_call_operand.hbm [shape: f32[2,32,256], index: 1, kind: input, shape index: {}]
  %s2 = inlined_call_operand.hbm [shape: f32[2,16,256], index: 2, kind: output, shape index: {}]
  %s3 = sld [smem:[#allocation0]]
  $region49: #{tpu_custom_call.1} parent=0
    _
  %s5 = ssub.s32 1, %s3
  %s6 = scalar_select 0, %s5, %s3
  $region1: #{tpu_custom_call.1} parent=0
    #allocation2 [shape = 'u8[8192]{0}', space=vmem, size = 0x2000, scoped, tag = 'input window, operand 0, single buffered']
    #allocation3 [shape = 's32[2]{0}', space=sflag, size = 0x8, scoped, tag = 'scoped memory for tpu_custom_call.1']
    #allocation4 [shape = 's32[2]{0}', space=sflag, size = 0x8, scoped, tag = 'scoped memory for tpu_custom_call.1']
    #allocation5 [shape = 'u8[65536]{0}', space=vmem, size = 0x10000, scoped, tag = 'input window, operand 1']
    #allocation6 [shape = 's32[2]{0}', space=sflag, size = 0x8, scoped, tag = 'scoped memory for tpu_custom_call.1']
    #allocation7 [shape = 'u8[32768]{0}', space=vmem, size = 0x8000, scoped, tag = 'output window, operand 0']
    %7 = vsyncpa [#allocation3], 0
    %8 = vsyncpa [#allocation6], 0
    %s9 = scalar_lea.sflag [#allocation6], 1
    %10 = vsyncpa %s9, 0
    %11 = vsyncpa [#allocation4], 0
    %s12 = scalar_lea.sflag [#allocation4], 1
    %13 = vsyncpa %s12, 0
    loop: start=0, step=1, limit=4
    $region2: #{tpu_custom_call.1} parent=1 // loop_pre_header
      _
    $region3: #{tpu_custom_call.1} parent=1 // loop_header
      %s15 = sphi 0, %s19
      %p16 = scmp.ge.s32.totalorder %s15, 4
      %s22 = sphi 0, %s34
      %s23 = sphi 0, %s30
      %s24 = sphi 0, %s22
      %s25 = sphi 0, %s23
      %s26 = sphi 0, %s24
      %s27 = sphi 0, %s25
      %s35 = sphi 0, %s35
      %s37 = sphi 0, %s35
      %s38 = sphi 0, %s37
      %s52 = sphi 0, %s38
      %s60 = sphi 0, %s62
      %s63 = sphi 0, %s60
      %s64 = sphi 0, %s63
      %s80 = sphi 0, %s64
      %s88 = sphi 0, %s90
      %s91 = sphi 0, %s88
      %s92 = sphi 0, %s91
      %s108 = sphi 0, %s92
    $region4: #{tpu_custom_call.1} parent=1 // loop_header_branch
      %18 = sbr.rel (%p16) target = $region8
    $region5: #{tpu_custom_call.1} parent=1 // loop_body
      %s20 = ssub.s32 %s15, 1
      %s21 = ssub.s32 %s15, 2
      %s28 = sadd.s32 1, %s23
      %p29 = scmp.ge.s32.totalorder %s28, 1
      %s30 = scalar_select %p29, 0, %s28
      %s31 = sadd.s32 1, %s22
      %s32 = scalar_select %p29, %s31, %s22
      %p33 = scmp.ge.s32.totalorder %s32, 2
      %s34 = scalar_select %p33, 0, %s32
      %s36 = sadd.s32 %s35, 1
      %p39 = scmp.eq.s32.totalorder %s15, 1
      %p40 = scmp.ne.s32.totalorder %s35, %s37
      %p41 = scmp.eq.s32.totalorder %s15, 0
      %p42 = por %p40, %p41
      %p43 = scmp.ne.s32.totalorder %s35, %s37
      %p44 = scmp.eq.s32.totalorder %s20, 1
      %p45 = por %p43, %p44
      %p46 = scmp.ne.s32.totalorder %s37, %s38
      %p47 = scmp.eq.s32.totalorder %s20, 0
      %p48 = por %p46, %p47
      %p49 = scmp.ne.s32.totalorder %s37, %s38
      %p50 = scmp.eq.s32.totalorder %s21, 1
      %p51 = por %p49, %p50
      %p53 = scmp.ne.s32.totalorder %s38, %s52
      %p54 = scmp.eq.s32.totalorder %s21, 0
      %p55 = por %p53, %p54
      %s56 = ssub.s32 %s22, %s34
      %s57 = ssub.s32 %s23, %s30
      %s58 = sor.u32 %s56, %s57
      %p59 = scmp.eq.s32.totalorder %s58, 0
      %s61 = sadd.s32 %s60, 1
      %s62 = scalar_select %p59, %s60, %s61
      %p65 = pneg %p59
      %p66 = scmp.eq.s32.totalorder %s15, 1
      %p67 = por %p65, %p66
      %p68 = scmp.ne.s32.totalorder %s60, %s63
      %p69 = scmp.eq.s32.totalorder %s15, 0
      %p70 = por %p68, %p69
      %p71 = scmp.ne.s32.totalorder %s60, %s63
      %p72 = scmp.eq.s32.totalorder %s20, 1
      %p73 = por %p71, %p72
      %p74 = scmp.ne.s32.totalorder %s63, %s64
      %p75 = scmp.eq.s32.totalorder %s20, 0
      %p76 = por %p74, %p75
      %p77 = scmp.ne.s32.totalorder %s63, %s64
      %p78 = scmp.eq.s32.totalorder %s21, 1
      %p79 = por %p77, %p78
      %p81 = scmp.ne.s32.totalorder %s64, %s80
      %p82 = scmp.eq.s32.totalorder %s21, 0
      %p83 = por %p81, %p82
      %s84 = ssub.s32 %s22, %s34
      %s85 = ssub.s32 %s23, %s30
      %s86 = sor.u32 %s84, %s85
      %p87 = scmp.eq.s32.totalorder %s86, 0
      %s89 = sadd.s32 %s88, 1
      %s90 = scalar_select %p87, %s88, %s89
      %p93 = pneg %p87
      %p94 = scmp.eq.s32.totalorder %s15, 1
      %p95 = por %p93, %p94
      %p96 = scmp.ne.s32.totalorder %s88, %s91
      %p97 = scmp.eq.s32.totalorder %s15, 0
      %p98 = por %p96, %p97
      %p99 = scmp.ne.s32.totalorder %s88, %s91
      %p100 = scmp.eq.s32.totalorder %s20, 1
      %p101 = por %p99, %p100
      %p102 = scmp.ne.s32.totalorder %s91, %s92
      %p103 = scmp.eq.s32.totalorder %s20, 0
      %p104 = por %p102, %p103
      %p105 = scmp.ne.s32.totalorder %s91, %s92
      %p106 = scmp.eq.s32.totalorder %s21, 1
      %p107 = por %p105, %p106
      %p109 = scmp.ne.s32.totalorder %s92, %s108
      %p110 = scmp.eq.s32.totalorder %s21, 0
      %p111 = por %p109, %p110
      %p112 = scmp.le.s32.totalorder 1, %s15
      %p113 = scmp.lt.s32.totalorder %s15, 3
      %p114 = pnand %p112, %p113
      %p115 = pneg %p114
      // Predicated region
      $region9: #{tpu_custom_call.1} parent=5 // pred_check
        _
      $region10: #{tpu_custom_call.1} parent=5 // pred_check_branch
        %117 = sbr.rel (%p114) target = $region12
      $region11: #{tpu_custom_call.1} parent=5 // pred_region
        %s118 = ssub.s32 %s15, 1
        // Predicated region
        $region13: #{tpu_custom_call.1} parent=11 // pred_check
          %p119 = pneg %p48
        $region14: #{tpu_custom_call.1} parent=11 // pred_check_branch
          %121 = sbr.rel (%p119) target = $region16
        $region15: #{tpu_custom_call.1} parent=11 // pred_region
          %s123 = ssub.s32 256, 256
          %124 = vsyncadd [#allocation3], %s123
          %s125 = sshll.u32 [#allocation2], 4
          %s126 = int_to_ptr.vmem [resolvable:$true] %s125
          %131 = dma.hbm_to_vmem [thread:$0]  %s0, 256, %s126, [#allocation3], 128, 128, 8
        $region16: #{tpu_custom_call.1} parent=11 // pred_fallthru
          _
      $region12: #{tpu_custom_call.1} parent=5 // pred_fallthru
        _
      %p132 = scmp.lt.s32.totalorder %s15, 2
      // Predicated region
      $region17: #{tpu_custom_call.1} parent=5 // pred_check
        %p133 = pneg %p132
      $region18: #{tpu_custom_call.1} parent=5 // pred_check_branch
        %135 = sbr.rel (%p133) target = $region20
      $region19: #{tpu_custom_call.1} parent=5 // pred_region
        // Predicated region
        $region21: #{tpu_custom_call.1} parent=19 // pred_check
          %p136 = pneg %p70
        $region22: #{tpu_custom_call.1} parent=19 // pred_check_branch
          %138 = sbr.rel (%p136) target = $region24
        $region23: #{tpu_custom_call.1} parent=19 // pred_region
          %s139 = sand.u32 %s60, 1
          %s140 = scalar_lea.sflag [#allocation6], %s139
          %s141 = sand.u32 %s60, 1
          %s142 = smul.addr %s141, 64
          %s143 = scalar_lea.vmem [#allocation5], %s142
          %s144 = smul.u32 2, %s23
          %s146 = ssub.s32 1024, 1024
          %147 = vsyncadd %s140, %s146
          %s148 = smul.addr %s22, 8
          %s149 = sadd.s32 %s144, %s148
          %s150 = smul.addr %s149, 128
          %s151 = scalar_lea.hbm %s1, %s150
          %s152 = sshll.u32 %s143, 4
          %s153 = int_to_ptr.vmem [resolvable:$true] %s152
          %158 = dma.hbm_to_vmem [thread:$0]  %s151, 1024, %s153, %s140, 256, 256, 16
        $region24: #{tpu_custom_call.1} parent=19 // pred_fallthru
          _
      $region20: #{tpu_custom_call.1} parent=5 // pred_fallthru
        _
      %p159 = scmp.le.s32.totalorder 1, %s15
      %p160 = scmp.lt.s32.totalorder %s15, 3
      %p161 = pnand %p159, %p160
      %p162 = pneg %p161
      // Predicated region
      $region25: #{tpu_custom_call.1} parent=5 // pred_check
        _
      $region26: #{tpu_custom_call.1} parent=5 // pred_check_branch
        %164 = sbr.rel (%p161) target = $region28
      $region27: #{tpu_custom_call.1} parent=5 // pred_region
        %s165 = ssub.s32 %s15, 1
        // Predicated region
        $region29: #{tpu_custom_call.1} parent=27 // pred_check
          %p166 = pneg %p48
        $region30: #{tpu_custom_call.1} parent=27 // pred_check_branch
          %168 = sbr.rel (%p166) target = $region32
        $region31: #{tpu_custom_call.1} parent=27 // pred_region
          %169 = dma.done [#allocation3], 256
        $region32: #{tpu_custom_call.1} parent=27 // pred_fallthru
          _
        %s170 = sand.u32 %s63, 1
        %s171 = scalar_lea.sflag [#allocation6], %s170
        %s172 = sand.u32 %s63, 1
        %s173 = smul.addr %s172, 64
        %s174 = scalar_lea.vmem [#allocation5], %s173
        // Predicated region
        $region33: #{tpu_custom_call.1} parent=27 // pred_check
          %p175 = pneg %p76
        $region34: #{tpu_custom_call.1} parent=27 // pred_check_branch
          %177 = sbr.rel (%p175) target = $region36
        $region35: #{tpu_custom_call.1} parent=27 // pred_region
          %178 = dma.done %s171, 1024
        $region36: #{tpu_custom_call.1} parent=27 // pred_fallthru
          _
        %p179 = pneg %p48
        %p180 = pneg %p45
        %s181 = sand.u32 %s63, 1
        %s182 = scalar_lea.sflag [#allocation6], %s181
        %s183 = sand.u32 %s63, 1
        %s184 = smul.addr %s183, 64
        %s185 = scalar_lea.vmem [#allocation5], %s184
        %p186 = pneg %p76
        %p187 = pneg %p73
        %p188 = pneg %p104
        %p189 = pneg %p101
        %s190 = sand.u32 %s91, 1
        %s191 = scalar_lea.sflag [#allocation4], %s190
        %s192 = sand.u32 %s91, 1
        %s193 = smul.addr %s192, 32
        %s194 = scalar_lea.vmem [#allocation7], %s193
        %s195 = smul.u32 2, %s25
        %s196 = smul.u32 2, %s25
        %v197 = vld [vmem:[#allocation2] sm:$0xff]
        %v198 = vld [vmem:[#allocation2 + $0x8] sm:$0xff]
        %v199 = vld [vmem:[%s174] sm:$0xff]
        %v200 = vld [vmem:[%s174 + $0x8] sm:$0xff]
        %v201 = vld [vmem:[%s174 + $0x10] sm:$0xff]
        %v202 = vld [vmem:[%s174 + $0x18] sm:$0xff]
        %v203 = vld [vmem:[%s174 + $0x20] sm:$0xff]
        %v204 = vld [vmem:[%s174 + $0x28] sm:$0xff]
        %v205 = vld [vmem:[%s174 + $0x30] sm:$0xff]
        %v206 = vld [vmem:[%s174 + $0x38] sm:$0xff]
        %v207 = vmax.f32 %v199, 0.0
        %v208 = vmax.f32 %v200, 0.0
        %v209 = vmax.f32 %v201, 0.0
        %v210 = vmax.f32 %v202, 0.0
        %v211 = vmax.f32 %v203, 0.0
        %v212 = vmax.f32 %v204, 0.0
        %v213 = vmax.f32 %v205, 0.0
        %v214 = vmax.f32 %v206, 0.0
        %v215 = vmin.f32 %v207, 6.0
        %v216 = vmin.f32 %v208, 6.0
        %v217 = vmin.f32 %v209, 6.0
        %v218 = vmin.f32 %v210, 6.0
        %v219 = vmin.f32 %v211, 6.0
        %v220 = vmin.f32 %v212, 6.0
        %v221 = vmin.f32 %v213, 6.0
        %v222 = vmin.f32 %v214, 6.0
        %vm223 = vcmask 261120
        %v225 = vsel %vm223, %v197, 0
        %v228 = vsel %vm223, %v198, 0
        %230 = vmatprep.subr.mxu0 %v216
        %231 = vmatpush1.msra.mxu0 %v215
        %232 = vmatprep.subr.mxu0 %v218
        %233 = vmatpush1.msra.mxu0 %v217
        %234 = vmatprep.subr.mxu0 %v220
        %235 = vmatpush1.msra.mxu0 %v219
        %236 = vmatprep.subr.mxu0 %v222
        %237 = vmatpush1.msra.mxu0 %v221
        %238 = vmatprep.subr.mxu0 0.0
        %239 = vmatpush1.msra.mxu0 0.0
        %240 = vmatprep.subr.mxu0 0.0
        %241 = vmatpush1.msra.mxu0 0.0
        %242 = vmatprep.subr.mxu0 0.0
        %243 = vmatpush1.msra.mxu0 0.0
        %244 = vmatprep.subr.mxu0 0.0
        %245 = vmatpush1.msra.mxu0 0.0
        %246 = vmatprep.subr.mxu0 0.0
        %247 = vmatpush1.msra.mxu0 0.0
        %248 = vmatprep.subr.mxu0 0.0
        %249 = vmatpush1.msra.mxu0 0.0
        %250 = vmatprep.subr.mxu0 0.0
        %251 = vmatpush1.msra.mxu0 0.0
        %252 = vmatprep.subr.mxu0 0.0
        %253 = vmatpush1.msra.mxu0 0.0
        %254 = vmatprep.subr.mxu0 0.0
        %255 = vmatpush1.msra.mxu0 0.0
        %256 = vmatprep.subr.mxu0 0.0
        %257 = vmatpush1.msra.mxu0 0.0
        %258 = vmatprep.subr.mxu0 0.0
        %259 = vmatpush1.msra.mxu0 0.0
        %260 = vmatprep.subr.mxu0 0.0
        %261 = vmatpush1.msra.mxu0 0.0
        %262 = vmatprep.subr.mxu0 0.0
        %263 = vmatpush1.msra.mxu0 0.0
        %264 = vmatprep.subr.mxu0 0.0
        %265 = vmatpush1.msra.mxu0 0.0
        %266 = vmatprep.subr.mxu0 0.0
        %267 = vmatpush1.msra.mxu0 0.0
        %268 = vmatprep.subr.mxu0 0.0
        %269 = vmatpush1.msra.mxu0 0.0
        %270 = vmatprep.subr.mxu0 0.0
        %271 = vmatpush1.msra.mxu0 0.0
        %272 = vmatprep.subr.mxu0 0.0
        %273 = vmatpush1.msra.mxu0 0.0
        %274 = vmatprep.subr.mxu0 0.0
        %275 = vmatpush1.msra.mxu0 0.0
        %276 = vmatprep.subr.mxu0 0.0
        %277 = vmatpush1.msra.mxu0 0.0
        %278 = vmatprep.subr.mxu0 0.0
        %279 = vmatpush1.msra.mxu0 0.0
        %280 = vmatprep.subr.mxu0 0.0
        %281 = vmatpush1.msra.mxu0 0.0
        %282 = vmatprep.subr.mxu0 0.0
        %283 = vmatpush1.msra.mxu0 0.0
        %284 = vmatprep.subr.mxu0 0.0
        %285 = vmatpush1.msra.mxu0 0.0
        %286 = vmatprep.subr.mxu0 0.0
        %287 = vmatpush1.msra.mxu0 0.0
        %288 = vmatprep.subr.mxu0 0.0
        %289 = vmatpush1.msra.mxu0 0.0
        %290 = vmatprep.subr.mxu0 0.0
        %291 = vmatpush1.msra.mxu0 0.0
        %292 = vmatprep.subr.mxu0 0.0
        %293 = vmatpush1.msra.mxu0 0.0
        %294 = vmatprep.mubr.f32.mxu0 0.0
        %295 = vmatmul.mubr.f32.gmra.mrb[0].mxu0 %v225
        %v296 = vpop.f32.mrb[0].mxu0
        %v297 = vadd.f32 0.0, %v296
        %v298 = vpop.f32.mrb[0].mxu0
        %v299 = vadd.f32 0.0, %v298
        %300 = vmatprep.mubr.f32.mxu0 0.0
        %301 = vmatmul.mubr.f32.gmra.mrb[0].mxu0 %v228
        %v302 = vpop.f32.mrb[0].mxu0
        %v303 = vadd.f32 0.0, %v302
        %v304 = vpop.f32.mrb[0].mxu0
        %v305 = vadd.f32 0.0, %v304
        %306 = vdwg.mxu0
        %307 = vst [vmem:[%s194] sm:$0xff] %v297
        %308 = vst [vmem:[%s194 + $0x8] sm:$0xff] %v299
        %309 = vst [vmem:[%s194 + $0x10] sm:$0xff] %v303
        %310 = vst [vmem:[%s194 + $0x18] sm:$0xff] %v305
        %s311 = sand.u32 %s91, 1
        %s312 = scalar_lea.sflag [#allocation4], %s311
        %s313 = sand.u32 %s91, 1
        %s314 = smul.addr %s313, 32
        %s315 = scalar_lea.vmem [#allocation7], %s314
        // Predicated region
        $region37: #{tpu_custom_call.1} parent=27 // pred_check
          %p316 = pneg %p101
        $region38: #{tpu_custom_call.1} parent=27 // pred_check_branch
          %318 = sbr.rel (%p316) target = $region40
        $region39: #{tpu_custom_call.1} parent=27 // pred_region
          %s319 = smul.u32 2, %s25
          %s321 = ssub.s32 512, 512
          %322 = vsyncadd %s312, %s321
          %s323 = smul.addr %s24, 4
          %s324 = sadd.s32 %s319, %s323
          %s325 = smul.addr %s324, 128
          %s326 = scalar_lea.hbm %s2, %s325
          %s327 = sshll.u32 %s315, 4
          %s328 = int_to_ptr.vmem [resolvable:$true] %s327
          %333 = dma.vmem_to_hbm [thread:$0]  %s328, 512, %s326, %s312, 256, 256, 16
        $region40: #{tpu_custom_call.1} parent=27 // pred_fallthru
          _
      $region28: #{tpu_custom_call.1} parent=5 // pred_fallthru
        _
      %p334 = scmp.le.s32.totalorder 2, %s15
      // Predicated region
      $region41: #{tpu_custom_call.1} parent=5 // pred_check
        %p335 = pneg %p334
      $region42: #{tpu_custom_call.1} parent=5 // pred_check_branch
        %337 = sbr.rel (%p335) target = $region44
      $region43: #{tpu_custom_call.1} parent=5 // pred_region
        %s338 = ssub.s32 %s15, 2
        // Predicated region
        $region45: #{tpu_custom_call.1} parent=43 // pred_check
          %p339 = pneg %p107
        $region46: #{tpu_custom_call.1} parent=43 // pred_check_branch
          %341 = sbr.rel (%p339) target = $region48
        $region47: #{tpu_custom_call.1} parent=43 // pred_region
          %s342 = sand.u32 %s92, 1
          %s343 = scalar_lea.sflag [#allocation4], %s342
          %s344 = sand.u32 %s92, 1
          %s345 = smul.addr %s344, 32
          %s346 = scalar_lea.vmem [#allocation7], %s345
          %347 = dma.done %s343, 512
        $region48: #{tpu_custom_call.1} parent=43 // pred_fallthru
          _
      $region44: #{tpu_custom_call.1} parent=5 // pred_fallthru
        _
    $region6: #{tpu_custom_call.1} parent=1 // loop_footer
      %s19 = sadd.s32 1, %s15
    $region7: #{tpu_custom_call.1} parent=1 // loop_footer_branch
      %14 = sbr.rel target = $region3
    $region8: #{tpu_custom_call.1} parent=1 // loop_exit
      _
    %348 = vsyncpa [#allocation3], 1
    %s349 = scalar_lea.sflag [#allocation3], 1
    %350 = vsyncpa %s349, 1
    %351 = vsyncpa [#allocation6], 1
    %s352 = scalar_lea.sflag [#allocation6], 1
    %353 = vsyncpa %s352, 1
    %354 = vsyncpa [#allocation4], 1
    %s355 = scalar_lea.sflag [#allocation4], 1
    %356 = vsyncpa %s355, 1

</llo_original>
